<compile_context>
chip_gen: v5e
topology: v5e:2x2
jax: 0.10.0
libtpu: 0.0.40
codegen_flags: <defaults>
</compile_context>

<pallas_src>
import functools

import jax
import jax.numpy as jnp
from jax.experimental import pallas as pl
from jax.experimental.pallas import tpu as pltpu


def _align_up(x, a):
    return ((x + a - 1) // a) * a


def _tpu_vmem_bytes():
    """Physical VMEM bytes of the local TPU; conservative default if unknown."""
    try:
        info = pltpu.get_tpu_info()
        v = getattr(info, "vmem_capacity_bytes", None)
        if v:
            return int(v)
    except Exception:
        pass
    return 64 << 20  # v7x per-TC size: safe lower bound on all generations


def _row_ce(pred_ref, target_ref):
    """Per-row soft-target cross entropy for one (tb, C) block, f32, shape (tb, 1)."""
    x = pred_ref[...].astype(jnp.float32)                       # (tb, C)
    t = target_ref[...].astype(jnp.float32)                     # (tb, C)

    m = jnp.max(x, axis=-1, keepdims=True)                      # (tb, 1)
    lse = jnp.log(jnp.sum(jnp.exp(x - m), axis=-1, keepdims=True)) + m
    t_sum = jnp.sum(t, axis=-1, keepdims=True)                  # (tb, 1)
    tx_sum = jnp.sum(t * x, axis=-1, keepdims=True)             # (tb, 1)

    # sum(-t * (x - lse)) == lse * sum(t) - sum(t * x)
    return lse * t_sum - tx_sum                                 # (tb, 1)


def _soft_ce_partial_kernel(pred_ref, target_ref, out_ref, *, n_rows, tb):
    """reduction='mean'/'sum': one f32 partial sum per tile, replicated into (8,128)."""
    ce = _row_ce(pred_ref, target_ref)                          # (tb, 1)

    def _write(ce_col):
        part = jnp.sum(ce_col, axis=0, keepdims=True)           # (1, 1)
        out_ref[...] = jnp.broadcast_to(part, (8, 128))         # dense, unmasked store

    if n_rows % tb != 0:
        i = pl.program_id(0)
        last = pl.num_programs(0) - 1

        @pl.when(i != last)
        def _():
            _write(ce)

        @pl.when(i == last)
        def _():
            # Mask rows past the real batch (select, not multiply -> NaN safe).
            row = i * tb + jax.lax.broadcasted_iota(jnp.int32, (tb, 1), 0)
            _write(jnp.where(row < n_rows, ce, jnp.float32(0.0)))
    else:
        _write(ce)


def _soft_ce_rows_kernel(pred_ref, target_ref, out_ref, *, n_rows, tb):
    """reduction='none': per-row CE for one (tb, C) block."""
    ce = _row_ce(pred_ref, target_ref)                          # (tb, 1)

    if n_rows % tb != 0:
        i = pl.program_id(0)
        last = pl.num_programs(0) - 1

        @pl.when(i != last)
        def _():
            out_ref[...] = ce

        @pl.when(i == last)
        def _():
            row = i * tb + jax.lax.broadcasted_iota(jnp.int32, (tb, 1), 0)
            out_ref[...] = jnp.where(row < n_rows, ce, jnp.float32(0.0))
    else:
        out_ref[...] = ce


def _per_row_vmem_cost(n_cols, ip, it):
    # double-buffered input blocks + f32 upcast/elementwise temps
    # + (tb,1) column temps in replicated-lane layout (~512 B/row each).
    return 2 * n_cols * (ip + it) + 4 * n_cols * 4 + 4 * 512 + 8


def _choose_tb(n_rows, n_cols, ip, it, align, vmem_cap):
    """Row tile sized from the chip's VMEM, aligned, with >= ~8 grid steps."""
    budget = (vmem_cap * 3) // 8      # ~24 MiB on v7x (64 MiB), ~48 MiB on v5e/v6e
    per_row = _per_row_vmem_cost(n_cols, ip, it)
    tb = max(align, budget // max(1, per_row))
    tb = max(align, (tb // align) * align)

    rows_padded = _align_up(n_rows, align)
    # Keep >= ~8 grid steps (pipeline overlap + balanced v7x megacore split).
    tb_steps = max(align, _align_up((rows_padded + 7) // 8, align))
    tb = min(tb, tb_steps, rows_padded)
    return max(align, tb)


def soft_target_cross_entropy(pred, target, reduction="mean", tb=None):
    """pred, target: (..., C). Returns f32 scalar ('mean'/'sum') or (...,) ('none')."""
    assert pred.shape == target.shape and pred.ndim >= 1
    batch_shape = pred.shape[:-1]
    C = pred.shape[-1]
    pred2 = pred.reshape(-1, C)
    target2 = target.reshape(-1, C)
    B = pred2.shape[0]

    vmem_cap = _tpu_vmem_bytes()
    ip = jnp.dtype(pred2.dtype).itemsize
    it = jnp.dtype(target2.dtype).itemsize
    # Sublane alignment from the *narrowest* dtype (bf16 packs 16/sublane-group, int8 32).
    align = {4: 8, 2: 16, 1: 32}.get(int(min(ip, it)), 8)

    if tb is None:
        tb = _choose_tb(B, C, ip, it, align, vmem_cap)
    assert tb % align == 0, (
        f"row tile {tb} must be a multiple of the packed sublane count {align}")

    num_tiles = pl.cdiv(B, tb)
    b_pad = num_tiles * tb

    # VMEM budget estimate: double-buffered inputs + f32 temps + column temps.
    est = tb * _per_row_vmem_cost(C, ip, it) + 2 * (8 * 128 * 4) + 2 * tb * 4
    vmem_limit = int(min(max(est + (4 << 20), 32 << 20), (vmem_cap * 3) // 5))

    in_specs = [pl.BlockSpec((tb, C), lambda i: (i, 0)),
                pl.BlockSpec((tb, C), lambda i: (i, 0))]
    cparams = pltpu.CompilerParams(
        dimension_semantics=("parallel",),
        vmem_limit_bytes=vmem_limit,
    )

    if reduction in ("mean", "sum"):
        partial = pl.pallas_call(
            functools.partial(_soft_ce_partial_kernel, n_rows=B, tb=tb),
            out_shape=jax.ShapeDtypeStruct((num_tiles * 8, 128), jnp.float32),
            grid_spec=pltpu.PrefetchScalarGridSpec(
                num_scalar_prefetch=0,
                grid=(num_tiles,),
                in_specs=in_specs,
                out_specs=pl.BlockSpec((8, 128), lambda i: (i, 0)),
            ),
            compiler_params=cparams,
        )(pred2, target2)
        # Each tile's (8, 128) block holds its partial sum replicated; pick one copy.
        total = jnp.sum(partial[::8, 0])
        if reduction == "mean":
            return total / jnp.float32(B)
        return total
    elif reduction == "none":
        ce = pl.pallas_call(
            functools.partial(_soft_ce_rows_kernel, n_rows=B, tb=tb),
            out_shape=jax.ShapeDtypeStruct((b_pad, 1), jnp.float32),
            grid_spec=pltpu.PrefetchScalarGridSpec(
                num_scalar_prefetch=0,
                grid=(num_tiles,),
                in_specs=in_specs,
                out_specs=pl.BlockSpec((tb, 1), lambda i: (i, 0)),
            ),
            compiler_params=cparams,
        )(pred2, target2)[:, 0]
        return ce[:B].reshape(batch_shape)
    else:
        raise ValueError(f"{reduction} is not a valid value for reduction")


def _reference(pred, target, reduction="mean"):
    logp = jax.nn.log_softmax(pred.astype(jnp.float32), axis=-1)
    ce = jnp.sum(-target.astype(jnp.float32) * logp, axis=-1)
    if reduction == "mean":
        return ce.mean()
    if reduction == "sum":
        return ce.sum()
    return ce


if __name__ == "__main__":
    key = jax.random.PRNGKey(0)
    k1, k2, k3, k4, k5, k6 = jax.random.split(key, 6)
    ok = True

    # Case 1: small, tile-aligned batch (auto tb -> multiple grid steps).
    B, C = 16, 128
    pred = jax.random.normal(k1, (B, C), dtype=jnp.float32)
    target = jax.nn.softmax(jax.random.normal(k2, (B, C), dtype=jnp.float32), axis=-1)
    for red in ("mean", "sum", "none"):
        out = jax.block_until_ready(soft_target_cross_entropy(pred, target, reduction=red))
        ref = _reference(pred, target, reduction=red)
        if not jnp.allclose(out, ref, rtol=1e-5, atol=1e-5):
            ok = False
            print(f"MISMATCH reduction={red}: {out} vs {ref}")

    # Case 2: batch not divisible by the row tile (cdiv grid + pl.when tail mask).
    B2, C2 = 50, 128
    pred2 = jax.random.normal(k3, (B2, C2), dtype=jnp.float32)
    target2 = jax.nn.softmax(jax.random.normal(k4, (B2, C2), dtype=jnp.float32), axis=-1)
    for red in ("mean", "sum", "none"):
        out = jax.block_until_ready(
            soft_target_cross_entropy(pred2, target2, reduction=red, tb=16))
        ref = _reference(pred2, target2, reduction=red)
        if not jnp.allclose(out, ref, rtol=1e-5, atol=1e-5):
            ok = False
            print(f"MISMATCH (tail) reduction={red}: {out} vs {ref}")

    # Case 3: bf16 inputs with a ragged batch (exercises 16-row packed-sublane
    # alignment, auto tb, tail masking, and the in-kernel f32 upcast).
    B3, C3 = 40, 256
    pred3 = jax.random.normal(k5, (B3, C3), dtype=jnp.float32).astype(jnp.bfloat16)
    target3 = jax.nn.softmax(
        jax.random.normal(k6, (B3, C3), dtype=jnp.float32), axis=-1).astype(jnp.bfloat16)
    for red in ("mean", "sum", "none"):
        out = jax.block_until_ready(
            soft_target_cross_entropy(pred3, target3, reduction=red))
        ref = _reference(pred3, target3, reduction=red)
        if not jnp.allclose(out, ref, rtol=1e-4, atol=1e-4):
            ok = False
            print(f"MISMATCH (bf16) reduction={red}: {out} vs {ref}")

    if ok:
        print("KERNEL_OK")
</pallas_src>

<mosaic_0001>
module attributes {stable_mosaic.version = 11 : i64} {
  func.func @_soft_ce_partial_kernel(%arg0: i32, %arg1: memref<8x128xf32, #tpu.memory_space<vmem>>, %arg2: memref<8x128xf32, #tpu.memory_space<vmem>>, %arg3: memref<8x128xf32, #tpu.memory_space<vmem>>) attributes {dimension_semantics = [#tpu.dimension_semantics<parallel>], iteration_bounds = array<i64: 2>, scalar_prefetch = 0 : i64, scratch_operands = 0 : i64, tpu.core_type = #tpu.core_type<tc>, window_params = [{transform_indices = @transform_0, window_bounds = array<i64: 8, 128>}, {transform_indices = @transform_1, window_bounds = array<i64: 8, 128>}, {transform_indices = @transform_2, window_bounds = array<i64: 8, 128>}]} {
    %c0 = arith.constant 0 : index
    %c0_0 = arith.constant 0 : index
    %0 = vector.load %arg1[%c0, %c0_0] : memref<8x128xf32, #tpu.memory_space<vmem>>, vector<8x128xf32>
    %c0_1 = arith.constant 0 : index
    %c0_2 = arith.constant 0 : index
    %1 = vector.load %arg2[%c0_1, %c0_2] : memref<8x128xf32, #tpu.memory_space<vmem>>, vector<8x128xf32>
    %cst = arith.constant dense<0xFF800000> : vector<8xf32>
    %2 = vector.multi_reduction <maximumf>, %0, %cst [1] : vector<8x128xf32> to vector<8xf32>
    %3 = vector.shape_cast %2 : vector<8xf32> to vector<8x1xf32>
    %4 = vector.broadcast %3 : vector<8x1xf32> to vector<8x128xf32>
    %5 = arith.subf %0, %4 : vector<8x128xf32>
    %6 = math.exp %5 : vector<8x128xf32>
    %cst_3 = arith.constant dense<0.000000e+00> : vector<8xf32>
    %7 = vector.multi_reduction <add>, %6, %cst_3 [1] : vector<8x128xf32> to vector<8xf32>
    %8 = vector.shape_cast %7 : vector<8xf32> to vector<8x1xf32>
    %9 = math.log %8 : vector<8x1xf32>
    %10 = arith.addf %9, %3 : vector<8x1xf32>
    %cst_4 = arith.constant dense<0.000000e+00> : vector<8xf32>
    %11 = vector.multi_reduction <add>, %1, %cst_4 [1] : vector<8x128xf32> to vector<8xf32>
    %12 = vector.shape_cast %11 : vector<8xf32> to vector<8x1xf32>
    %13 = arith.mulf %1, %0 : vector<8x128xf32>
    %cst_5 = arith.constant dense<0.000000e+00> : vector<8xf32>
    %14 = vector.multi_reduction <add>, %13, %cst_5 [1] : vector<8x128xf32> to vector<8xf32>
    %15 = vector.shape_cast %14 : vector<8xf32> to vector<8x1xf32>
    %16 = arith.mulf %10, %12 : vector<8x1xf32>
    %17 = arith.subf %16, %15 : vector<8x1xf32>
    %cst_6 = arith.constant dense<0.000000e+00> : vector<1xf32>
    %18 = vector.multi_reduction <add>, %17, %cst_6 [0] : vector<8x1xf32> to vector<1xf32>
    %19 = vector.shape_cast %18 : vector<1xf32> to vector<1x1xf32>
    %20 = vector.shape_cast %19 : vector<1x1xf32> to vector<1x1xf32>
    %21 = vector.broadcast %20 : vector<1x1xf32> to vector<8x128xf32>
    %c0_7 = arith.constant 0 : index
    %c0_8 = arith.constant 0 : index
    %22 = vector.load %arg3[%c0_7, %c0_8] : memref<8x128xf32, #tpu.memory_space<vmem>>, vector<8x128xf32>
    tpu.vector_store %arg3[%c0_7, %c0_8], %21 {strides = array<i32>} : memref<8x128xf32, #tpu.memory_space<vmem>>, vector<8x128xf32>,
    return
  }
  func.func @transform_0(%arg0: i32) -> (i32, i32) {
    %c0_i32 = arith.constant 0 : i32
    %c0_i32_0 = arith.constant 0 : i32
    return %arg0, %c0_i32 : i32, i32
  }
  func.func @transform_1(%arg0: i32) -> (i32, i32) {
    %c0_i32 = arith.constant 0 : i32
    %c0_i32_0 = arith.constant 0 : i32
    return %arg0, %c0_i32 : i32, i32
  }
  func.func @transform_2(%arg0: i32) -> (i32, i32) {
    %c0_i32 = arith.constant 0 : i32
    %c0_i32_0 = arith.constant 0 : i32
    return %arg0, %c0_i32 : i32, i32
  }
}

</mosaic_0001>

<llo_original>
// kernel: tpu_custom_call.1
$region0: #{tpu_custom_call.1}
  #allocation0 [shape = 'u32[]', space=smem, size = 0x4, offset = 0x4, fixed_abs, tag = 'smem constant byte address 0x4 - core index']
  #allocation1 [shape = 'u32[72,128]{1,0:T(1,128)}', space=vmem, size = 0x9000, scoped, tag = 'internal scratch']
  %s0 = inlined_call_operand.hbm [shape: f32[16,128], index: 0, kind: input, shape index: {}]
  %s1 = inlined_call_operand.hbm [shape: f32[16,128], index: 1, kind: input, shape index: {}]
  %s2 = inlined_call_operand.hbm [shape: f32[16,128], index: 2, kind: output, shape index: {}]
  %s3 = sld [smem:[#allocation0]]
  $region49: #{tpu_custom_call.1} parent=0
    _
  %s5 = ssub.s32 1, %s3
  %s6 = scalar_select 0, %s5, %s3
  $region1: #{tpu_custom_call.1} parent=0
    #allocation2 [shape = 'u8[8192]{0}', space=vmem, size = 0x2000, scoped, tag = 'input window, operand 0']
    #allocation3 [shape = 's32[2]{0}', space=sflag, size = 0x8, scoped, tag = 'scoped memory for tpu_custom_call.1']
    #allocation4 [shape = 's32[2]{0}', space=sflag, size = 0x8, scoped, tag = 'scoped memory for tpu_custom_call.1']
    #allocation5 [shape = 'u8[8192]{0}', space=vmem, size = 0x2000, scoped, tag = 'input window, operand 1']
    #allocation6 [shape = 's32[2]{0}', space=sflag, size = 0x8, scoped, tag = 'scoped memory for tpu_custom_call.1']
    #allocation7 [shape = 'u8[8192]{0}', space=vmem, size = 0x2000, scoped, tag = 'output window, operand 0']
    %7 = vsyncpa [#allocation3], 0
    %s8 = scalar_lea.sflag [#allocation3], 1
    %9 = vsyncpa %s8, 0
    %10 = vsyncpa [#allocation6], 0
    %s11 = scalar_lea.sflag [#allocation6], 1
    %12 = vsyncpa %s11, 0
    %13 = vsyncpa [#allocation4], 0
    %s14 = scalar_lea.sflag [#allocation4], 1
    %15 = vsyncpa %s14, 0
    loop: start=0, step=1, limit=4
    $region2: #{tpu_custom_call.1} parent=1 // loop_pre_header
      _
    $region3: #{tpu_custom_call.1} parent=1 // loop_header
      %s17 = sphi 0, %s21
      %p18 = scmp.ge.s32.totalorder %s17, 4
      %s27 = sphi 0, %s29
      %s30 = sphi 0, %s27
      %s31 = sphi 0, %s30
      %s47 = sphi 0, %s31
      %s53 = sphi 0, %s55
      %s56 = sphi 0, %s53
      %s57 = sphi 0, %s56
      %s73 = sphi 0, %s57
      %s79 = sphi 0, %s81
      %s82 = sphi 0, %s79
      %s83 = sphi 0, %s82
      %s99 = sphi 0, %s83
    $region4: #{tpu_custom_call.1} parent=1 // loop_header_branch
      %20 = sbr.rel (%p18) target = $region8
    $region5: #{tpu_custom_call.1} parent=1 // loop_body
      %s22 = ssub.s32 %s17, 1
      %s23 = ssub.s32 %s17, 2
      %s24 = sadd.s32 %s17, 1
      %s25 = ssub.s32 %s17, %s24
      %p26 = scmp.eq.s32.totalorder %s25, 0
      %s28 = sadd.s32 %s27, 1
      %s29 = scalar_select %p26, %s27, %s28
      %p32 = pneg %p26
      %p33 = scmp.eq.s32.totalorder %s17, 1
      %p34 = por %p32, %p33
      %p35 = scmp.ne.s32.totalorder %s27, %s30
      %p36 = scmp.eq.s32.totalorder %s17, 0
      %p37 = por %p35, %p36
      %p38 = scmp.ne.s32.totalorder %s27, %s30
      %p39 = scmp.eq.s32.totalorder %s22, 1
      %p40 = por %p38, %p39
      %p41 = scmp.ne.s32.totalorder %s30, %s31
      %p42 = scmp.eq.s32.totalorder %s22, 0
      %p43 = por %p41, %p42
      %p44 = scmp.ne.s32.totalorder %s30, %s31
      %p45 = scmp.eq.s32.totalorder %s23, 1
      %p46 = por %p44, %p45
      %p48 = scmp.ne.s32.totalorder %s31, %s47
      %p49 = scmp.eq.s32.totalorder %s23, 0
      %p50 = por %p48, %p49
      %s51 = ssub.s32 %s17, %s24
      %p52 = scmp.eq.s32.totalorder %s51, 0
      %s54 = sadd.s32 %s53, 1
      %s55 = scalar_select %p52, %s53, %s54
      %p58 = pneg %p52
      %p59 = scmp.eq.s32.totalorder %s17, 1
      %p60 = por %p58, %p59
      %p61 = scmp.ne.s32.totalorder %s53, %s56
      %p62 = scmp.eq.s32.totalorder %s17, 0
      %p63 = por %p61, %p62
      %p64 = scmp.ne.s32.totalorder %s53, %s56
      %p65 = scmp.eq.s32.totalorder %s22, 1
      %p66 = por %p64, %p65
      %p67 = scmp.ne.s32.totalorder %s56, %s57
      %p68 = scmp.eq.s32.totalorder %s22, 0
      %p69 = por %p67, %p68
      %p70 = scmp.ne.s32.totalorder %s56, %s57
      %p71 = scmp.eq.s32.totalorder %s23, 1
      %p72 = por %p70, %p71
      %p74 = scmp.ne.s32.totalorder %s57, %s73
      %p75 = scmp.eq.s32.totalorder %s23, 0
      %p76 = por %p74, %p75
      %s77 = ssub.s32 %s17, %s24
      %p78 = scmp.eq.s32.totalorder %s77, 0
      %s80 = sadd.s32 %s79, 1
      %s81 = scalar_select %p78, %s79, %s80
      %p84 = pneg %p78
      %p85 = scmp.eq.s32.totalorder %s17, 1
      %p86 = por %p84, %p85
      %p87 = scmp.ne.s32.totalorder %s79, %s82
      %p88 = scmp.eq.s32.totalorder %s17, 0
      %p89 = por %p87, %p88
      %p90 = scmp.ne.s32.totalorder %s79, %s82
      %p91 = scmp.eq.s32.totalorder %s22, 1
      %p92 = por %p90, %p91
      %p93 = scmp.ne.s32.totalorder %s82, %s83
      %p94 = scmp.eq.s32.totalorder %s22, 0
      %p95 = por %p93, %p94
      %p96 = scmp.ne.s32.totalorder %s82, %s83
      %p97 = scmp.eq.s32.totalorder %s23, 1
      %p98 = por %p96, %p97
      %p100 = scmp.ne.s32.totalorder %s83, %s99
      %p101 = scmp.eq.s32.totalorder %s23, 0
      %p102 = por %p100, %p101
      %p103 = scmp.le.s32.totalorder 1, %s17
      %p104 = scmp.lt.s32.totalorder %s17, 3
      %p105 = pnand %p103, %p104
      %p106 = pneg %p105
      // Predicated region
      $region9: #{tpu_custom_call.1} parent=5 // pred_check
        _
      $region10: #{tpu_custom_call.1} parent=5 // pred_check_branch
        %108 = sbr.rel (%p105) target = $region12
      $region11: #{tpu_custom_call.1} parent=5 // pred_region
        %s109 = ssub.s32 %s17, 1
      $region12: #{tpu_custom_call.1} parent=5 // pred_fallthru
        _
      %p110 = scmp.lt.s32.totalorder %s17, 2
      // Predicated region
      $region13: #{tpu_custom_call.1} parent=5 // pred_check
        %p111 = pneg %p110
      $region14: #{tpu_custom_call.1} parent=5 // pred_check_branch
        %113 = sbr.rel (%p111) target = $region16
      $region15: #{tpu_custom_call.1} parent=5 // pred_region
        // Predicated region
        $region17: #{tpu_custom_call.1} parent=15 // pred_check
          %p114 = pneg %p37
        $region18: #{tpu_custom_call.1} parent=15 // pred_check_branch
          %116 = sbr.rel (%p114) target = $region20
        $region19: #{tpu_custom_call.1} parent=15 // pred_region
          %s117 = sand.u32 %s27, 1
          %s118 = scalar_lea.sflag [#allocation3], %s117
          %s119 = sand.u32 %s27, 1
          %s120 = smul.addr %s119, 8
          %s121 = scalar_lea.vmem [#allocation2], %s120
          %123 = vsyncadd %s118, 0
          %s124 = smul.addr %s17, 8
          %s125 = scalar_lea.hbm %s0, %s124
          %s127 = sshll.u32 %s125, 4
          %s128 = int_to_ptr.hbm [resolvable:$true] %s127
          %s129 = sshll.u32 %s121, 4
          %s130 = int_to_ptr.vmem [resolvable:$true] %s129
          %132 = dma.hbm_to_vmem [thread:$0]  %s128, 128, %s130, %s118
        $region20: #{tpu_custom_call.1} parent=15 // pred_fallthru
          _
        // Predicated region
        $region21: #{tpu_custom_call.1} parent=15 // pred_check
          %p133 = pneg %p63
        $region22: #{tpu_custom_call.1} parent=15 // pred_check_branch
          %135 = sbr.rel (%p133) target = $region24
        $region23: #{tpu_custom_call.1} parent=15 // pred_region
          %s136 = sand.u32 %s53, 1
          %s137 = scalar_lea.sflag [#allocation6], %s136
          %s138 = sand.u32 %s53, 1
          %s139 = smul.addr %s138, 8
          %s140 = scalar_lea.vmem [#allocation5], %s139
          %142 = vsyncadd %s137, 0
          %s143 = smul.addr %s17, 8
          %s144 = scalar_lea.hbm %s1, %s143
          %s146 = sshll.u32 %s144, 4
          %s147 = int_to_ptr.hbm [resolvable:$true] %s146
          %s148 = sshll.u32 %s140, 4
          %s149 = int_to_ptr.vmem [resolvable:$true] %s148
          %151 = dma.hbm_to_vmem [thread:$0]  %s147, 128, %s149, %s137
        $region24: #{tpu_custom_call.1} parent=15 // pred_fallthru
          _
      $region16: #{tpu_custom_call.1} parent=5 // pred_fallthru
        _
      %p152 = scmp.le.s32.totalorder 1, %s17
      %p153 = scmp.lt.s32.totalorder %s17, 3
      %p154 = pnand %p152, %p153
      %p155 = pneg %p154
      // Predicated region
      $region25: #{tpu_custom_call.1} parent=5 // pred_check
        _
      $region26: #{tpu_custom_call.1} parent=5 // pred_check_branch
        %157 = sbr.rel (%p154) target = $region28
      $region27: #{tpu_custom_call.1} parent=5 // pred_region
        %s158 = ssub.s32 %s17, 1
        %s159 = sand.u32 %s30, 1
        %s160 = scalar_lea.sflag [#allocation3], %s159
        %s161 = sand.u32 %s30, 1
        %s162 = smul.addr %s161, 8
        %s163 = scalar_lea.vmem [#allocation2], %s162
        // Predicated region
        $region29: #{tpu_custom_call.1} parent=27 // pred_check
          %p164 = pneg %p43
        $region30: #{tpu_custom_call.1} parent=27 // pred_check_branch
          %166 = sbr.rel (%p164) target = $region32
        $region31: #{tpu_custom_call.1} parent=27 // pred_region
          %168 = dma.done %s160, 128
        $region32: #{tpu_custom_call.1} parent=27 // pred_fallthru
          _
        %s169 = sand.u32 %s56, 1
        %s170 = scalar_lea.sflag [#allocation6], %s169
        %s171 = sand.u32 %s56, 1
        %s172 = smul.addr %s171, 8
        %s173 = scalar_lea.vmem [#allocation5], %s172
        // Predicated region
        $region33: #{tpu_custom_call.1} parent=27 // pred_check
          %p174 = pneg %p69
        $region34: #{tpu_custom_call.1} parent=27 // pred_check_branch
          %176 = sbr.rel (%p174) target = $region36
        $region35: #{tpu_custom_call.1} parent=27 // pred_region
          %178 = dma.done %s170, 128
        $region36: #{tpu_custom_call.1} parent=27 // pred_fallthru
          _
        %s179 = sand.u32 %s30, 1
        %s180 = scalar_lea.sflag [#allocation3], %s179
        %s181 = sand.u32 %s30, 1
        %s182 = smul.addr %s181, 8
        %s183 = scalar_lea.vmem [#allocation2], %s182
        %p184 = pneg %p43
        %p185 = pneg %p40
        %s186 = sand.u32 %s56, 1
        %s187 = scalar_lea.sflag [#allocation6], %s186
        %s188 = sand.u32 %s56, 1
        %s189 = smul.addr %s188, 8
        %s190 = scalar_lea.vmem [#allocation5], %s189
        %p191 = pneg %p69
        %p192 = pneg %p66
        %p193 = pneg %p95
        %p194 = pneg %p92
        %s195 = sand.u32 %s82, 1
        %s196 = scalar_lea.sflag [#allocation4], %s195
        %s197 = sand.u32 %s82, 1
        %s198 = smul.addr %s197, 8
        %s199 = scalar_lea.vmem [#allocation7], %s198
        %v200 = vld [vmem:[%s163] sm:$0xff]
        %v201 = vld [vmem:[%s173] sm:$0xff]
        %202 = vmax.xlane.f32.xlu0 %v200
        %v203 = vpop.xlane.xlu0 %202
        %v204 = vsub.f32 %v200, %v203
        %v205 = vmul.f32 %v204, 1.442695
        %v206 = vpow.pop %v205
        %207 = vadd.xlane.f32.xlu0 %v206
        %v208 = vpop.xlane.xlu0 %207
        %v209 = vlog2.pop %v208
        %v210 = vmul.f32 %v209, 0.6931472
        %v211 = vadd.f32 %v210, %v203
        %212 = vadd.xlane.f32.xlu0 %v201
        %v213 = vpop.xlane.xlu0 %212
        %v214 = vmul.f32 %v201, %v200
        %215 = vadd.xlane.f32.xlu0 %v214
        %v216 = vpop.xlane.xlu0 %215
        %v217 = vmul.f32 %v211, %v213
        %v218 = vsub.f32 %v217, %v216
        %v219 = vrot.slane %v218, 4
        %v220 = vadd.f32 %v218, %v219
        %v221 = vrot.slane %v220, 2
        %v222 = vadd.f32 %v220, %v221
        %v223 = vrot.slane %v222, 1
        %v224 = vadd.f32 %v222, %v223
        %225 = vst [vmem:[%s199] sm:$0xff] %v224
        %s226 = sand.u32 %s82, 1
        %s227 = scalar_lea.sflag [#allocation4], %s226
        %s228 = sand.u32 %s82, 1
        %s229 = smul.addr %s228, 8
        %s230 = scalar_lea.vmem [#allocation7], %s229
        // Predicated region
        $region37: #{tpu_custom_call.1} parent=27 // pred_check
          %p231 = pneg %p92
        $region38: #{tpu_custom_call.1} parent=27 // pred_check_branch
          %233 = sbr.rel (%p231) target = $region40
        $region39: #{tpu_custom_call.1} parent=27 // pred_region
          %235 = vsyncadd %s227, 0
          %s236 = smul.addr %s22, 8
          %s237 = scalar_lea.hbm %s2, %s236
          %s239 = sshll.u32 %s230, 4
          %s240 = int_to_ptr.vmem [resolvable:$true] %s239
          %s241 = sshll.u32 %s237, 4
          %s242 = int_to_ptr.hbm [resolvable:$true] %s241
          %244 = dma.vmem_to_hbm [thread:$0]  %s240, 128, %s242, %s227
        $region40: #{tpu_custom_call.1} parent=27 // pred_fallthru
          _
      $region28: #{tpu_custom_call.1} parent=5 // pred_fallthru
        _
      %p245 = scmp.le.s32.totalorder 2, %s17
      // Predicated region
      $region41: #{tpu_custom_call.1} parent=5 // pred_check
        %p246 = pneg %p245
      $region42: #{tpu_custom_call.1} parent=5 // pred_check_branch
        %248 = sbr.rel (%p246) target = $region44
      $region43: #{tpu_custom_call.1} parent=5 // pred_region
        %s249 = ssub.s32 %s17, 2
        // Predicated region
        $region45: #{tpu_custom_call.1} parent=43 // pred_check
          %p250 = pneg %p98
        $region46: #{tpu_custom_call.1} parent=43 // pred_check_branch
          %252 = sbr.rel (%p250) target = $region48
        $region47: #{tpu_custom_call.1} parent=43 // pred_region
          %s253 = sand.u32 %s83, 1
          %s254 = scalar_lea.sflag [#allocation4], %s253
          %s255 = sand.u32 %s83, 1
          %s256 = smul.addr %s255, 8
          %s257 = scalar_lea.vmem [#allocation7], %s256
          %259 = dma.done %s254, 128
        $region48: #{tpu_custom_call.1} parent=43 // pred_fallthru
          _
      $region44: #{tpu_custom_call.1} parent=5 // pred_fallthru
        _
    $region6: #{tpu_custom_call.1} parent=1 // loop_footer
      %s21 = sadd.s32 1, %s17
    $region7: #{tpu_custom_call.1} parent=1 // loop_footer_branch
      %16 = sbr.rel target = $region3
    $region8: #{tpu_custom_call.1} parent=1 // loop_exit
      _
    %260 = vsyncpa [#allocation3], 1
    %s261 = scalar_lea.sflag [#allocation3], 1
    %262 = vsyncpa %s261, 1
    %263 = vsyncpa [#allocation6], 1
    %s264 = scalar_lea.sflag [#allocation6], 1
    %265 = vsyncpa %s264, 1
    %266 = vsyncpa [#allocation4], 1
    %s267 = scalar_lea.sflag [#allocation4], 1
    %268 = vsyncpa %s267, 1

</llo_original>
